<compile_context>
chip_gen: v5e
topology: v5e:2x2
jax: 0.10.0
libtpu: 0.0.40
codegen_flags: <defaults>
</compile_context>

<pallas_src>
import functools

import numpy as np

import jax
import jax.numpy as jnp
from jax.experimental import pallas as pl
from jax.experimental.pallas import tpu as pltpu

EPS = 1e-5  # nn.BatchNorm2d default


# ------------------------------- kernel --------------------------------------


def basic_block_kernel(xp_ref, w1t_ref, w2t_ref, mc_ref, g1_ref, b1_ref,
                       g2_ref, b2_ref, sc_ref, o_ref, act_ref, *, n, h, w, cout):
    """Fused conv1+BN1+ReLU -> conv2+BN2 + residual + ReLU (stride 1).

    xp_ref:  (N, H+2, (W+2)*Cin)  bf16  zero-padded input, row-major NHWC lanes
    w1t_ref: (3, (W+2)*Cin, W*Cout) bf16  conv1 row-Toeplitz weight slabs (per dh)
    w2t_ref: (3, (W+2)*Cout, W*Cout) bf16 conv2 row-Toeplitz weight slabs
    mc_ref:  (W*Cout, W*Cout) f32  channel-spread matrix (per-channel sum + bcast)
    g*/b*:   (1, W*Cout) f32  BN affine params pre-tiled across x
    sc_ref:  (N*H, W*Cout) f32  identity shortcut (flattened NHWC)
    o_ref:   (N*H, W*Cout) f32  output
    act_ref: (N, H+2, (W+2)*Cout) f32 VMEM scratch for the padded conv1 activation
    """
    wp = w + 2
    l = w * cout                       # output lanes
    nh = n * h
    inv_cnt = 1.0 / float(n * h * w)   # BN pixel count
    mc = mc_ref[...]                   # load channel-spread matrix once

    def bn_affine(acc, g, b):
        # One-pass batch stats in f32; channel reduce + re-broadcast via one matmul.
        s = jnp.sum(acc, axis=0, keepdims=True)                      # (1, l)
        ss = jnp.sum(acc * acc, axis=0, keepdims=True)               # (1, l)
        s = jnp.dot(s, mc, preferred_element_type=jnp.float32)       # per-channel sums
        ss = jnp.dot(ss, mc, preferred_element_type=jnp.float32)
        mean = s * inv_cnt
        var = ss * inv_cnt - mean * mean
        scale = g * jax.lax.rsqrt(var + EPS)                         # EUP slot
        bias = b - mean * scale
        return acc * scale + bias

    # ---- conv1: accumulate 3 row-Toeplitz matmuls (dw folded into K) ----
    acc1 = jnp.dot(xp_ref[:, 0:h, :].reshape(nh, -1), w1t_ref[0],
                   preferred_element_type=jnp.float32)
    for dh in (1, 2):
        acc1 = acc1 + jnp.dot(xp_ref[:, dh:dh + h, :].reshape(nh, -1), w1t_ref[dh],
                              preferred_element_type=jnp.float32)
    out1 = jnp.maximum(bn_affine(acc1, g1_ref[...], b1_ref[...]), 0.0)

    # ---- stage the activation on-chip; zero ONLY the 1-pixel halo ----
    act_ref[:, 0:1, :] = jnp.zeros((n, 1, wp * cout), jnp.float32)
    act_ref[:, h + 1:h + 2, :] = jnp.zeros((n, 1, wp * cout), jnp.float32)
    act_ref[:, 1:h + 1, 0:cout] = jnp.zeros((n, h, cout), jnp.float32)
    act_ref[:, 1:h + 1, (wp - 1) * cout:wp * cout] = jnp.zeros((n, h, cout), jnp.float32)
    act_ref[:, 1:h + 1, cout:(wp - 1) * cout] = out1.reshape(n, h, l)

    # ---- conv2: same accumulate-over-dh structure (taps cast to bf16 at the dot) ----
    acc2 = jnp.dot(act_ref[:, 0:h, :].reshape(nh, -1).astype(jnp.bfloat16), w2t_ref[0],
                   preferred_element_type=jnp.float32)
    for dh in (1, 2):
        acc2 = acc2 + jnp.dot(
            act_ref[:, dh:dh + h, :].reshape(nh, -1).astype(jnp.bfloat16), w2t_ref[dh],
            preferred_element_type=jnp.float32)

    # ---- BN2 + residual add + ReLU ----
    out2 = bn_affine(acc2, g2_ref[...], b2_ref[...]) + sc_ref[...]
    o_ref[...] = jnp.maximum(out2, 0.0)


# --------------------------- pallas_call wrapper ------------------------------


def _resident(shape):
    nd = len(shape)
    return pl.BlockSpec(shape, lambda i, _nd=nd: (0,) * _nd)


@jax.jit
def _basic_block_fwd(x_nchw, w1t, w2t, mc, g1t, b1t, g2t, b2t):
    x = jnp.transpose(x_nchw, (0, 2, 3, 1)).astype(jnp.float32)      # NHWC
    n, h, w, cin = x.shape
    l = g1t.shape[1]
    cout = l // w                       # fused path requires cin == cout

    # conv1 input: zero-padded, lane-dense (x, channel) layout, bf16 for the MXU
    xp = jnp.pad(x, ((0, 0), (1, 1), (1, 1), (0, 0)))
    xp = xp.reshape(n, h + 2, (w + 2) * cin).astype(jnp.bfloat16)
    sc = x.reshape(n * h, w * cin)      # identity shortcut, f32

    lin = (w + 2) * cin
    lp = (w + 2) * cout
    flops = 2 * n * h * l * 3 * (lin + lp) + 2 * 4 * l * l
    bytes_accessed = (xp.size * 2 + w1t.size * 2 + w2t.size * 2 + mc.size * 4
                      + 4 * l * 4 + sc.size * 4 + n * h * l * 4)

    kernel = functools.partial(basic_block_kernel, n=n, h=h, w=w, cout=cout)
    out = pl.pallas_call(
        kernel,
        out_shape=jax.ShapeDtypeStruct((n * h, l), jnp.float32),
        grid=(1,),  # TODO(synk): two-phase row-tiled grid for production shapes (global BN stats)
        in_specs=[_resident(a.shape) for a in (xp, w1t, w2t, mc, g1t, b1t, g2t, b2t, sc)],
        out_specs=_resident((n * h, l)),
        scratch_shapes=[pltpu.VMEM((n, h + 2, (w + 2) * cout), jnp.float32)],
        input_output_aliases={8: 0},    # shortcut buffer reused for the output
        compiler_params=pltpu.CompilerParams(
            dimension_semantics=("arbitrary",),
            vmem_limit_bytes=32 * 1024 * 1024),  # well under v7x's 64 MiB physical VMEM
        cost_estimate=pl.CostEstimate(flops=flops, transcendentals=2 * l,
                                      bytes_accessed=bytes_accessed),
    )(xp, w1t, w2t, mc, g1t, b1t, g2t, b2t, sc)

    return jnp.transpose(out.reshape(n, h, w, cout), (0, 3, 1, 2))   # NCHW


# ------------------------------ glue (host) -----------------------------------


def _row_toeplitz(w_hwio, width):
    """(3,3,Ci,Co) conv weight -> (3, (width+2)*Ci, width*Co) row-Toeplitz slabs (stride 1)."""
    kh, kw, ci, co = w_hwio.shape
    t = np.zeros((kh, (width + kw - 1) * ci, width * co), np.float32)
    for dh in range(kh):
        for dw in range(kw):
            for x in range(width):
                t[dh, (x + dw) * ci:(x + dw + 1) * ci, x * co:(x + 1) * co] = w_hwio[dh, dw]
    return t


def _channel_spread(width, c):
    """(width*c, width*c) 0/1 matrix: (v @ M)[x*c + k] = sum_x' v[x'*c + k]."""
    lane_ch = np.arange(width * c) % c
    return (lane_ch[:, None] == lane_ch[None, :]).astype(np.float32)


# ------------------------------- module ---------------------------------------


class BasicBlockPallas:
    expansion = 1

    def __init__(self, in_planes, planes, stride=1, option="A", *, key):
        k1, k2, k3, k4 = jax.random.split(key, 4)
        self.in_planes = in_planes
        self.planes = planes
        self.stride = stride
        self.option = option
        # conv weights stored HWIO (3,3,Cin,Cout); deterministic synthetic init
        self.w1 = 0.1 * jax.random.normal(k1, (3, 3, in_planes, planes), jnp.float32)
        self.w2 = 0.1 * jax.random.normal(k2, (3, 3, planes, planes), jnp.float32)
        # BatchNorm affine params (perturbed from PyTorch's 1/0 init to keep the test strict)
        self.g1 = (1.0 + 0.1 * jax.random.normal(k3, (1, planes))).astype(jnp.float32)
        self.b1 = (0.1 * jax.random.normal(k4, (1, planes))).astype(jnp.float32)
        self.g2 = jnp.ones((1, planes), jnp.float32)
        self.b2 = jnp.zeros((1, planes), jnp.float32)
        self._consts = {}

    def _constants(self, width):
        if width not in self._consts:
            w1t = jnp.asarray(_row_toeplitz(np.asarray(self.w1), width), jnp.bfloat16)
            w2t = jnp.asarray(_row_toeplitz(np.asarray(self.w2), width), jnp.bfloat16)
            mc = jnp.asarray(_channel_spread(width, self.planes), jnp.float32)
            g1t = jnp.tile(self.g1, (1, width))
            b1t = jnp.tile(self.b1, (1, width))
            g2t = jnp.tile(self.g2, (1, width))
            b2t = jnp.tile(self.b2, (1, width))
            self._consts[width] = (w1t, w2t, mc, g1t, b1t, g2t, b2t)
        return self._consts[width]

    def __call__(self, x_nchw):
        if self.stride != 1 or self.in_planes != self.planes:
            # TODO(synk): strided conv1 + option 'A'/'B' downsampling shortcut not ported to
            # the fused row-Toeplitz kernel (the non-downsampling resnet_s block tested here
            # uses stride=1 with an identity shortcut).
            raise NotImplementedError("only stride=1 with in_planes == planes is fused")
        width = x_nchw.shape[3]
        return _basic_block_fwd(x_nchw, *self._constants(width))


# ------------------------------ reference -------------------------------------


def _reference(block, x_nchw, matmul_dtype=jnp.float32):
    x = jnp.transpose(x_nchw, (0, 2, 3, 1)).astype(jnp.float32)

    def conv(y, w, stride):
        return jax.lax.conv_general_dilated(
            y.astype(matmul_dtype), w.astype(matmul_dtype), (stride, stride),
            ((1, 1), (1, 1)), dimension_numbers=("NHWC", "HWIO", "NHWC"),
            preferred_element_type=jnp.float32)

    def bn(y, g, b):
        mean = jnp.mean(y, axis=(0, 1, 2), keepdims=True)
        var = jnp.mean((y - mean) ** 2, axis=(0, 1, 2), keepdims=True)
        return (y - mean) * (g.reshape(1, 1, 1, -1) * jax.lax.rsqrt(var + EPS)) \
            + b.reshape(1, 1, 1, -1)

    o = jax.nn.relu(bn(conv(x, block.w1, block.stride), block.g1, block.b1))
    o = bn(conv(o, block.w2, 1), block.g2, block.b2)
    o = jax.nn.relu(o + x)   # identity shortcut (stride=1, in_planes == planes)
    return jnp.transpose(o, (0, 3, 1, 2))


# --------------------------------- main ----------------------------------------


if __name__ == "__main__":
    key = jax.random.PRNGKey(0)
    kx, kp = jax.random.split(key)

    # Small shapes consistent with the module: batch=2, channels=4, spatial=16
    x = jax.random.normal(kx, (2, 4, 16, 16), jnp.float32)  # NCHW

    block = BasicBlockPallas(in_planes=4, planes=4, stride=1, option="A", key=kp)

    out = jax.block_until_ready(block(x))

    # Strict check vs. a reference using the same bf16 MXU operand precision.
    ref_bf16 = _reference(block, x, matmul_dtype=jnp.bfloat16)
    # Loose check vs. the pure-f32 PyTorch-style forward (bf16 operand rounding only).
    ref_f32 = _reference(block, x, matmul_dtype=jnp.float32)

    assert out.shape == ref_f32.shape, (out.shape, ref_f32.shape)
    assert jnp.allclose(out, ref_bf16, rtol=5e-3, atol=5e-3), \
        float(jnp.max(jnp.abs(out - ref_bf16)))
    assert jnp.allclose(out, ref_f32, rtol=1e-1, atol=1e-1), \
        float(jnp.max(jnp.abs(out - ref_f32)))

    print("KERNEL_OK")
</pallas_src>

<mosaic_0001>
module attributes {stable_mosaic.version = 11 : i64} {
  func.func @basic_block_kernel(%arg0: i32, %arg1: memref<2x18x72xbf16, #tpu.memory_space<vmem>>, %arg2: memref<3x72x64xbf16, #tpu.memory_space<vmem>>, %arg3: memref<3x72x64xbf16, #tpu.memory_space<vmem>>, %arg4: memref<64x64xf32, #tpu.memory_space<vmem>>, %arg5: memref<1x64xf32, #tpu.memory_space<vmem>>, %arg6: memref<1x64xf32, #tpu.memory_space<vmem>>, %arg7: memref<1x64xf32, #tpu.memory_space<vmem>>, %arg8: memref<1x64xf32, #tpu.memory_space<vmem>>, %arg9: memref<32x64xf32, #tpu.memory_space<vmem>>, %arg10: memref<32x64xf32, #tpu.memory_space<vmem>>, %arg11: memref<2x18x72xf32, #tpu.memory_space<vmem>>) attributes {dimension_semantics = [#tpu.dimension_semantics<arbitrary>], iteration_bounds = array<i64: 1>, scalar_prefetch = 0 : i64, scratch_operands = 1 : i64, tpu.core_type = #tpu.core_type<tc>, window_params = [{pipeline_mode = #tpu.pipeline_mode<synchronous>, transform_indices = @transform_0, window_bounds = array<i64: 2, 18, 72>}, {pipeline_mode = #tpu.pipeline_mode<synchronous>, transform_indices = @transform_1, window_bounds = array<i64: 3, 72, 64>}, {pipeline_mode = #tpu.pipeline_mode<synchronous>, transform_indices = @transform_2, window_bounds = array<i64: 3, 72, 64>}, {pipeline_mode = #tpu.pipeline_mode<synchronous>, transform_indices = @transform_3, window_bounds = array<i64: 64, 64>}, {pipeline_mode = #tpu.pipeline_mode<synchronous>, transform_indices = @transform_4, window_bounds = array<i64: 1, 64>}, {pipeline_mode = #tpu.pipeline_mode<synchronous>, transform_indices = @transform_5, window_bounds = array<i64: 1, 64>}, {pipeline_mode = #tpu.pipeline_mode<synchronous>, transform_indices = @transform_6, window_bounds = array<i64: 1, 64>}, {pipeline_mode = #tpu.pipeline_mode<synchronous>, transform_indices = @transform_7, window_bounds = array<i64: 1, 64>}, {pipeline_mode = #tpu.pipeline_mode<synchronous>, transform_indices = @transform_8, window_bounds = array<i64: 32, 64>}, {pipeline_mode = #tpu.pipeline_mode<synchronous>, transform_indices = @transform_9, window_bounds = array<i64: 32, 64>}]} {
    %c0 = arith.constant 0 : index
    %c0_0 = arith.constant 0 : index
    %0 = vector.load %arg4[%c0, %c0_0] : memref<64x64xf32, #tpu.memory_space<vmem>>, vector<64x64xf32>
    %c0_1 = arith.constant 0 : index
    %c0_2 = arith.constant 0 : index
    %c0_3 = arith.constant 0 : index
    %1 = vector.load %arg1[%c0_1, %c0_2, %c0_3] : memref<2x18x72xbf16, #tpu.memory_space<vmem>>, vector<2x16x72xbf16>
    %2 = vector.shape_cast %1 : vector<2x16x72xbf16> to vector<32x72xbf16>
    %c0_4 = arith.constant 0 : index
    %c0_5 = arith.constant 0 : index
    %c0_6 = arith.constant 0 : index
    %3 = vector.load %arg2[%c0_4, %c0_5, %c0_6] : memref<3x72x64xbf16, #tpu.memory_space<vmem>>, vector<1x72x64xbf16>
    %4 = vector.shape_cast %3 : vector<1x72x64xbf16> to vector<72x64xbf16>
    %cst = arith.constant dense<0.000000e+00> : vector<32x64xf32>
    %5 = tpu.matmul %2, %4, %cst {dimension_numbers = #tpu.dot_dimension_numbers<[1], [0], [0], [1], [0, 0, 1, 1], [], []>} : vector<32x72xbf16>, vector<72x64xbf16>, vector<32x64xf32> -> vector<32x64xf32>
    %c0_7 = arith.constant 0 : index
    %c1 = arith.constant 1 : index
    %c0_8 = arith.constant 0 : index
    %6 = vector.load %arg1[%c0_7, %c1, %c0_8] : memref<2x18x72xbf16, #tpu.memory_space<vmem>>, vector<2x16x72xbf16>
    %7 = vector.shape_cast %6 : vector<2x16x72xbf16> to vector<32x72xbf16>
    %c1_9 = arith.constant 1 : index
    %c0_10 = arith.constant 0 : index
    %c0_11 = arith.constant 0 : index
    %8 = vector.load %arg2[%c1_9, %c0_10, %c0_11] : memref<3x72x64xbf16, #tpu.memory_space<vmem>>, vector<1x72x64xbf16>
    %9 = vector.shape_cast %8 : vector<1x72x64xbf16> to vector<72x64xbf16>
    %cst_12 = arith.constant dense<0.000000e+00> : vector<32x64xf32>
    %10 = tpu.matmul %7, %9, %cst_12 {dimension_numbers = #tpu.dot_dimension_numbers<[1], [0], [0], [1], [0, 0, 1, 1], [], []>} : vector<32x72xbf16>, vector<72x64xbf16>, vector<32x64xf32> -> vector<32x64xf32>
    %11 = arith.addf %5, %10 : vector<32x64xf32>
    %c0_13 = arith.constant 0 : index
    %c2 = arith.constant 2 : index
    %c0_14 = arith.constant 0 : index
    %12 = vector.load %arg1[%c0_13, %c2, %c0_14] : memref<2x18x72xbf16, #tpu.memory_space<vmem>>, vector<2x16x72xbf16>
    %13 = vector.shape_cast %12 : vector<2x16x72xbf16> to vector<32x72xbf16>
    %c2_15 = arith.constant 2 : index
    %c0_16 = arith.constant 0 : index
    %c0_17 = arith.constant 0 : index
    %14 = vector.load %arg2[%c2_15, %c0_16, %c0_17] : memref<3x72x64xbf16, #tpu.memory_space<vmem>>, vector<1x72x64xbf16>
    %15 = vector.shape_cast %14 : vector<1x72x64xbf16> to vector<72x64xbf16>
    %cst_18 = arith.constant dense<0.000000e+00> : vector<32x64xf32>
    %16 = tpu.matmul %13, %15, %cst_18 {dimension_numbers = #tpu.dot_dimension_numbers<[1], [0], [0], [1], [0, 0, 1, 1], [], []>} : vector<32x72xbf16>, vector<72x64xbf16>, vector<32x64xf32> -> vector<32x64xf32>
    %17 = arith.addf %11, %16 : vector<32x64xf32>
    %c0_19 = arith.constant 0 : index
    %c0_20 = arith.constant 0 : index
    %18 = vector.load %arg5[%c0_19, %c0_20] : memref<1x64xf32, #tpu.memory_space<vmem>>, vector<1x64xf32>
    %c0_21 = arith.constant 0 : index
    %c0_22 = arith.constant 0 : index
    %19 = vector.load %arg6[%c0_21, %c0_22] : memref<1x64xf32, #tpu.memory_space<vmem>>, vector<1x64xf32>
    %cst_23 = arith.constant dense<0.000000e+00> : vector<64xf32>
    %20 = vector.multi_reduction <add>, %17, %cst_23 [0] : vector<32x64xf32> to vector<64xf32>
    %21 = vector.shape_cast %20 : vector<64xf32> to vector<1x64xf32>
    %22 = arith.mulf %17, %17 : vector<32x64xf32>
    %cst_24 = arith.constant dense<0.000000e+00> : vector<64xf32>
    %23 = vector.multi_reduction <add>, %22, %cst_24 [0] : vector<32x64xf32> to vector<64xf32>
    %24 = vector.shape_cast %23 : vector<64xf32> to vector<1x64xf32>
    %cst_25 = arith.constant dense<0.000000e+00> : vector<1x64xf32>
    %25 = tpu.matmul %21, %0, %cst_25 {dimension_numbers = #tpu.dot_dimension_numbers<[1], [0], [0], [1], [0, 0, 1, 1], [], []>} : vector<1x64xf32>, vector<64x64xf32>, vector<1x64xf32> -> vector<1x64xf32>
    %cst_26 = arith.constant dense<0.000000e+00> : vector<1x64xf32>
    %26 = tpu.matmul %24, %0, %cst_26 {dimension_numbers = #tpu.dot_dimension_numbers<[1], [0], [0], [1], [0, 0, 1, 1], [], []>} : vector<1x64xf32>, vector<64x64xf32>, vector<1x64xf32> -> vector<1x64xf32>
    %cst_27 = arith.constant 0.001953125 : f32
    %27 = vector.broadcast %cst_27 : f32 to vector<1x64xf32>
    %28 = arith.mulf %25, %27 : vector<1x64xf32>
    %cst_28 = arith.constant 0.001953125 : f32
    %29 = vector.broadcast %cst_28 : f32 to vector<1x64xf32>
    %30 = arith.mulf %26, %29 : vector<1x64xf32>
    %31 = arith.mulf %28, %28 : vector<1x64xf32>
    %32 = arith.subf %30, %31 : vector<1x64xf32>
    %cst_29 = arith.constant 9.99999974E-6 : f32
    %33 = vector.broadcast %cst_29 : f32 to vector<1x64xf32>
    %34 = arith.addf %32, %33 : vector<1x64xf32>
    %35 = math.rsqrt %34 : vector<1x64xf32>
    %36 = arith.mulf %18, %35 : vector<1x64xf32>
    %37 = arith.mulf %28, %36 : vector<1x64xf32>
    %38 = arith.subf %19, %37 : vector<1x64xf32>
    %39 = vector.broadcast %36 : vector<1x64xf32> to vector<32x64xf32>
    %40 = arith.mulf %17, %39 : vector<32x64xf32>
    %41 = vector.broadcast %38 : vector<1x64xf32> to vector<32x64xf32>
    %42 = arith.addf %40, %41 : vector<32x64xf32>
    %cst_30 = arith.constant 0.000000e+00 : f32
    %43 = vector.broadcast %cst_30 : f32 to vector<32x64xf32>
    %44 = arith.maximumf %42, %43 : vector<32x64xf32>
    %cst_31 = arith.constant 0.000000e+00 : f32
    %45 = vector.broadcast %cst_31 : f32 to vector<2x1x72xf32>
    %c0_32 = arith.constant 0 : index
    %c0_33 = arith.constant 0 : index
    %c0_34 = arith.constant 0 : index
    %46 = vector.load %arg11[%c0_32, %c0_33, %c0_34] : memref<2x18x72xf32, #tpu.memory_space<vmem>>, vector<2x1x72xf32>
    tpu.vector_store %arg11[%c0_32, %c0_33, %c0_34], %45 {strides = array<i32>} : memref<2x18x72xf32, #tpu.memory_space<vmem>>, vector<2x1x72xf32>,
    %cst_35 = arith.constant 0.000000e+00 : f32
    %47 = vector.broadcast %cst_35 : f32 to vector<2x1x72xf32>
    %c0_36 = arith.constant 0 : index
    %c17 = arith.constant 17 : index
    %c0_37 = arith.constant 0 : index
    %48 = vector.load %arg11[%c0_36, %c17, %c0_37] : memref<2x18x72xf32, #tpu.memory_space<vmem>>, vector<2x1x72xf32>
    tpu.vector_store %arg11[%c0_36, %c17, %c0_37], %47 {strides = array<i32>} : memref<2x18x72xf32, #tpu.memory_space<vmem>>, vector<2x1x72xf32>,
    %cst_38 = arith.constant 0.000000e+00 : f32
    %49 = vector.broadcast %cst_38 : f32 to vector<2x16x4xf32>
    %c0_39 = arith.constant 0 : index
    %c1_40 = arith.constant 1 : index
    %c0_41 = arith.constant 0 : index
    %50 = vector.load %arg11[%c0_39, %c1_40, %c0_41] : memref<2x18x72xf32, #tpu.memory_space<vmem>>, vector<2x16x4xf32>
    tpu.vector_store %arg11[%c0_39, %c1_40, %c0_41], %49 {strides = array<i32>} : memref<2x18x72xf32, #tpu.memory_space<vmem>>, vector<2x16x4xf32>,
    %cst_42 = arith.constant 0.000000e+00 : f32
    %51 = vector.broadcast %cst_42 : f32 to vector<2x16x4xf32>
    %c0_43 = arith.constant 0 : index
    %c1_44 = arith.constant 1 : index
    %c68 = arith.constant 68 : index
    %52 = vector.load %arg11[%c0_43, %c1_44, %c68] : memref<2x18x72xf32, #tpu.memory_space<vmem>>, vector<2x16x4xf32>
    tpu.vector_store %arg11[%c0_43, %c1_44, %c68], %51 {strides = array<i32>} : memref<2x18x72xf32, #tpu.memory_space<vmem>>, vector<2x16x4xf32>,
    %53 = vector.shape_cast %44 : vector<32x64xf32> to vector<2x16x64xf32>
    %c0_45 = arith.constant 0 : index
    %c1_46 = arith.constant 1 : index
    %c4 = arith.constant 4 : index
    %54 = vector.load %arg11[%c0_45, %c1_46, %c4] : memref<2x18x72xf32, #tpu.memory_space<vmem>>, vector<2x16x64xf32>
    tpu.vector_store %arg11[%c0_45, %c1_46, %c4], %53 {strides = array<i32>} : memref<2x18x72xf32, #tpu.memory_space<vmem>>, vector<2x16x64xf32>,
    %c0_47 = arith.constant 0 : index
    %c0_48 = arith.constant 0 : index
    %c0_49 = arith.constant 0 : index
    %55 = vector.load %arg11[%c0_47, %c0_48, %c0_49] : memref<2x18x72xf32, #tpu.memory_space<vmem>>, vector<2x16x72xf32>
    %56 = vector.shape_cast %55 : vector<2x16x72xf32> to vector<32x72xf32>
    %57 = arith.truncf %56 : vector<32x72xf32> to vector<32x72xbf16>
    %c0_50 = arith.constant 0 : index
    %c0_51 = arith.constant 0 : index
    %c0_52 = arith.constant 0 : index
    %58 = vector.load %arg3[%c0_50, %c0_51, %c0_52] : memref<3x72x64xbf16, #tpu.memory_space<vmem>>, vector<1x72x64xbf16>
    %59 = vector.shape_cast %58 : vector<1x72x64xbf16> to vector<72x64xbf16>
    %cst_53 = arith.constant dense<0.000000e+00> : vector<32x64xf32>
    %60 = tpu.matmul %57, %59, %cst_53 {dimension_numbers = #tpu.dot_dimension_numbers<[1], [0], [0], [1], [0, 0, 1, 1], [], []>} : vector<32x72xbf16>, vector<72x64xbf16>, vector<32x64xf32> -> vector<32x64xf32>
    %c0_54 = arith.constant 0 : index
    %c1_55 = arith.constant 1 : index
    %c0_56 = arith.constant 0 : index
    %61 = vector.load %arg11[%c0_54, %c1_55, %c0_56] : memref<2x18x72xf32, #tpu.memory_space<vmem>>, vector<2x16x72xf32>
    %62 = vector.shape_cast %61 : vector<2x16x72xf32> to vector<32x72xf32>
    %63 = arith.truncf %62 : vector<32x72xf32> to vector<32x72xbf16>
    %c1_57 = arith.constant 1 : index
    %c0_58 = arith.constant 0 : index
    %c0_59 = arith.constant 0 : index
    %64 = vector.load %arg3[%c1_57, %c0_58, %c0_59] : memref<3x72x64xbf16, #tpu.memory_space<vmem>>, vector<1x72x64xbf16>
    %65 = vector.shape_cast %64 : vector<1x72x64xbf16> to vector<72x64xbf16>
    %cst_60 = arith.constant dense<0.000000e+00> : vector<32x64xf32>
    %66 = tpu.matmul %63, %65, %cst_60 {dimension_numbers = #tpu.dot_dimension_numbers<[1], [0], [0], [1], [0, 0, 1, 1], [], []>} : vector<32x72xbf16>, vector<72x64xbf16>, vector<32x64xf32> -> vector<32x64xf32>
    %67 = arith.addf %60, %66 : vector<32x64xf32>
    %c0_61 = arith.constant 0 : index
    %c2_62 = arith.constant 2 : index
    %c0_63 = arith.constant 0 : index
    %68 = vector.load %arg11[%c0_61, %c2_62, %c0_63] : memref<2x18x72xf32, #tpu.memory_space<vmem>>, vector<2x16x72xf32>
    %69 = vector.shape_cast %68 : vector<2x16x72xf32> to vector<32x72xf32>
    %70 = arith.truncf %69 : vector<32x72xf32> to vector<32x72xbf16>
    %c2_64 = arith.constant 2 : index
    %c0_65 = arith.constant 0 : index
    %c0_66 = arith.constant 0 : index
    %71 = vector.load %arg3[%c2_64, %c0_65, %c0_66] : memref<3x72x64xbf16, #tpu.memory_space<vmem>>, vector<1x72x64xbf16>
    %72 = vector.shape_cast %71 : vector<1x72x64xbf16> to vector<72x64xbf16>
    %cst_67 = arith.constant dense<0.000000e+00> : vector<32x64xf32>
    %73 = tpu.matmul %70, %72, %cst_67 {dimension_numbers = #tpu.dot_dimension_numbers<[1], [0], [0], [1], [0, 0, 1, 1], [], []>} : vector<32x72xbf16>, vector<72x64xbf16>, vector<32x64xf32> -> vector<32x64xf32>
    %74 = arith.addf %67, %73 : vector<32x64xf32>
    %c0_68 = arith.constant 0 : index
    %c0_69 = arith.constant 0 : index
    %75 = vector.load %arg7[%c0_68, %c0_69] : memref<1x64xf32, #tpu.memory_space<vmem>>, vector<1x64xf32>
    %c0_70 = arith.constant 0 : index
    %c0_71 = arith.constant 0 : index
    %76 = vector.load %arg8[%c0_70, %c0_71] : memref<1x64xf32, #tpu.memory_space<vmem>>, vector<1x64xf32>
    %cst_72 = arith.constant dense<0.000000e+00> : vector<64xf32>
    %77 = vector.multi_reduction <add>, %74, %cst_72 [0] : vector<32x64xf32> to vector<64xf32>
    %78 = vector.shape_cast %77 : vector<64xf32> to vector<1x64xf32>
    %79 = arith.mulf %74, %74 : vector<32x64xf32>
    %cst_73 = arith.constant dense<0.000000e+00> : vector<64xf32>
    %80 = vector.multi_reduction <add>, %79, %cst_73 [0] : vector<32x64xf32> to vector<64xf32>
    %81 = vector.shape_cast %80 : vector<64xf32> to vector<1x64xf32>
    %cst_74 = arith.constant dense<0.000000e+00> : vector<1x64xf32>
    %82 = tpu.matmul %78, %0, %cst_74 {dimension_numbers = #tpu.dot_dimension_numbers<[1], [0], [0], [1], [0, 0, 1, 1], [], []>} : vector<1x64xf32>, vector<64x64xf32>, vector<1x64xf32> -> vector<1x64xf32>
    %cst_75 = arith.constant dense<0.000000e+00> : vector<1x64xf32>
    %83 = tpu.matmul %81, %0, %cst_75 {dimension_numbers = #tpu.dot_dimension_numbers<[1], [0], [0], [1], [0, 0, 1, 1], [], []>} : vector<1x64xf32>, vector<64x64xf32>, vector<1x64xf32> -> vector<1x64xf32>
    %cst_76 = arith.constant 0.001953125 : f32
    %84 = vector.broadcast %cst_76 : f32 to vector<1x64xf32>
    %85 = arith.mulf %82, %84 : vector<1x64xf32>
    %cst_77 = arith.constant 0.001953125 : f32
    %86 = vector.broadcast %cst_77 : f32 to vector<1x64xf32>
    %87 = arith.mulf %83, %86 : vector<1x64xf32>
    %88 = arith.mulf %85, %85 : vector<1x64xf32>
    %89 = arith.subf %87, %88 : vector<1x64xf32>
    %cst_78 = arith.constant 9.99999974E-6 : f32
    %90 = vector.broadcast %cst_78 : f32 to vector<1x64xf32>
    %91 = arith.addf %89, %90 : vector<1x64xf32>
    %92 = math.rsqrt %91 : vector<1x64xf32>
    %93 = arith.mulf %75, %92 : vector<1x64xf32>
    %94 = arith.mulf %85, %93 : vector<1x64xf32>
    %95 = arith.subf %76, %94 : vector<1x64xf32>
    %96 = vector.broadcast %93 : vector<1x64xf32> to vector<32x64xf32>
    %97 = arith.mulf %74, %96 : vector<32x64xf32>
    %98 = vector.broadcast %95 : vector<1x64xf32> to vector<32x64xf32>
    %99 = arith.addf %97, %98 : vector<32x64xf32>
    %c0_79 = arith.constant 0 : index
    %c0_80 = arith.constant 0 : index
    %100 = vector.load %arg9[%c0_79, %c0_80] : memref<32x64xf32, #tpu.memory_space<vmem>>, vector<32x64xf32>
    %101 = arith.addf %99, %100 : vector<32x64xf32>
    %cst_81 = arith.constant 0.000000e+00 : f32
    %102 = vector.broadcast %cst_81 : f32 to vector<32x64xf32>
    %103 = arith.maximumf %101, %102 : vector<32x64xf32>
    %c0_82 = arith.constant 0 : index
    %c0_83 = arith.constant 0 : index
    %104 = vector.load %arg10[%c0_82, %c0_83] : memref<32x64xf32, #tpu.memory_space<vmem>>, vector<32x64xf32>
    tpu.vector_store %arg10[%c0_82, %c0_83], %103 {strides = array<i32>} : memref<32x64xf32, #tpu.memory_space<vmem>>, vector<32x64xf32>,
    return
  }
  func.func @transform_0(%arg0: i32) -> (i32, i32, i32) {
    %c0_i32 = arith.constant 0 : i32
    %c0_i32_0 = arith.constant 0 : i32
    %c0_i32_1 = arith.constant 0 : i32
    %c0_i32_2 = arith.constant 0 : i32
    return %c0_i32, %c0_i32_0, %c0_i32_1 : i32, i32, i32
  }
  func.func @transform_1(%arg0: i32) -> (i32, i32, i32) {
    %c0_i32 = arith.constant 0 : i32
    %c0_i32_0 = arith.constant 0 : i32
    %c0_i32_1 = arith.constant 0 : i32
    %c0_i32_2 = arith.constant 0 : i32
    return %c0_i32, %c0_i32_0, %c0_i32_1 : i32, i32, i32
  }
  func.func @transform_2(%arg0: i32) -> (i32, i32, i32) {
    %c0_i32 = arith.constant 0 : i32
    %c0_i32_0 = arith.constant 0 : i32
    %c0_i32_1 = arith.constant 0 : i32
    %c0_i32_2 = arith.constant 0 : i32
    return %c0_i32, %c0_i32_0, %c0_i32_1 : i32, i32, i32
  }
  func.func @transform_3(%arg0: i32) -> (i32, i32) {
    %c0_i32 = arith.constant 0 : i32
    %c0_i32_0 = arith.constant 0 : i32
    %c0_i32_1 = arith.constant 0 : i32
    return %c0_i32, %c0_i32_0 : i32, i32
  }
  func.func @transform_4(%arg0: i32) -> (i32, i32) {
    %c0_i32 = arith.constant 0 : i32
    %c0_i32_0 = arith.constant 0 : i32
    %c0_i32_1 = arith.constant 0 : i32
    return %c0_i32, %c0_i32_0 : i32, i32
  }
  func.func @transform_5(%arg0: i32) -> (i32, i32) {
    %c0_i32 = arith.constant 0 : i32
    %c0_i32_0 = arith.constant 0 : i32
    %c0_i32_1 = arith.constant 0 : i32
    return %c0_i32, %c0_i32_0 : i32, i32
  }
  func.func @transform_6(%arg0: i32) -> (i32, i32) {
    %c0_i32 = arith.constant 0 : i32
    %c0_i32_0 = arith.constant 0 : i32
    %c0_i32_1 = arith.constant 0 : i32
    return %c0_i32, %c0_i32_0 : i32, i32
  }
  func.func @transform_7(%arg0: i32) -> (i32, i32) {
    %c0_i32 = arith.constant 0 : i32
    %c0_i32_0 = arith.constant 0 : i32
    %c0_i32_1 = arith.constant 0 : i32
    return %c0_i32, %c0_i32_0 : i32, i32
  }
  func.func @transform_8(%arg0: i32) -> (i32, i32) {
    %c0_i32 = arith.constant 0 : i32
    %c0_i32_0 = arith.constant 0 : i32
    %c0_i32_1 = arith.constant 0 : i32
    return %c0_i32, %c0_i32_0 : i32, i32
  }
  func.func @transform_9(%arg0: i32) -> (i32, i32) {
    %c0_i32 = arith.constant 0 : i32
    %c0_i32_0 = arith.constant 0 : i32
    %c0_i32_1 = arith.constant 0 : i32
    return %c0_i32, %c0_i32_0 : i32, i32
  }
}

</mosaic_0001>

<llo_original>
// kernel: _basic_block_fwd.1
$region0: #{_basic_block_fwd.1}
  #allocation0 [shape = 'u32[]', space=smem, size = 0x4, offset = 0x4, fixed_abs, tag = 'smem constant byte address 0x4 - core index']
  #allocation1 [shape = 'u32[72,128]{1,0:T(1,128)}', space=vmem, size = 0x9000, scoped, tag = 'internal scratch']
  #allocation2 [shape = 'f32[2,18,72]{2,1,0:T(8,128)}', space=vmem, size = 0x6000, scoped, tag = 'scratch operand']
  %s0 = inlined_call_operand.vmem [shape: bf16[2,18,72], index: 0, kind: input, shape index: {}]
  %s1 = inlined_call_operand.vmem [shape: bf16[3,72,64], index: 1, kind: input, shape index: {}]
  %s2 = inlined_call_operand.vmem [shape: bf16[3,72,64], index: 2, kind: input, shape index: {}]
  %s3 = inlined_call_operand.vmem [shape: f32[64,64], index: 3, kind: input, shape index: {}]
  %s4 = inlined_call_operand.vmem [shape: f32[1,64], index: 4, kind: input, shape index: {}]
  %s5 = inlined_call_operand.vmem [shape: f32[1,64], index: 5, kind: input, shape index: {}]
  %s6 = inlined_call_operand.vmem [shape: f32[1,64], index: 6, kind: input, shape index: {}]
  %s7 = inlined_call_operand.vmem [shape: f32[1,64], index: 7, kind: input, shape index: {}]
  %s8 = inlined_call_operand.vmem [shape: f32[32,64], index: 8, kind: input, shape index: {}, may-alias: {8,9}]
  %s9 = inlined_call_operand.vmem [shape: f32[32,64], index: 9, kind: output, shape index: {}, may-alias: {8,9}]
  %s10 = sld [smem:[#allocation0]]
  $region46: #{_basic_block_fwd.1} parent=0
    _
  %s12 = ssub.s32 1, %s10
  %s13 = scalar_select 0, %s12, %s10
  // Predicated region
  $region2: #{_basic_block_fwd.1} parent=0 // pred_check
    _
  $region3: #{_basic_block_fwd.1} parent=0 // pred_check_branch
    %15 = sbr.rel (0) target = $region5
  $region4: #{_basic_block_fwd.1} parent=0 // pred_region
    _
  $region5: #{_basic_block_fwd.1} parent=0 // pred_fallthru
    _
  // Predicated region
  $region6: #{_basic_block_fwd.1} parent=0 // pred_check
    _
  $region7: #{_basic_block_fwd.1} parent=0 // pred_check_branch
    %17 = sbr.rel (0) target = $region9
  $region8: #{_basic_block_fwd.1} parent=0 // pred_region
    _
  $region9: #{_basic_block_fwd.1} parent=0 // pred_fallthru
    _
  // Predicated region
  $region10: #{_basic_block_fwd.1} parent=0 // pred_check
    _
  $region11: #{_basic_block_fwd.1} parent=0 // pred_check_branch
    %19 = sbr.rel (0) target = $region13
  $region12: #{_basic_block_fwd.1} parent=0 // pred_region
    _
  $region13: #{_basic_block_fwd.1} parent=0 // pred_fallthru
    _
  // Predicated region
  $region14: #{_basic_block_fwd.1} parent=0 // pred_check
    _
  $region15: #{_basic_block_fwd.1} parent=0 // pred_check_branch
    %21 = sbr.rel (0) target = $region17
  $region16: #{_basic_block_fwd.1} parent=0 // pred_region
    _
  $region17: #{_basic_block_fwd.1} parent=0 // pred_fallthru
    _
  // Predicated region
  $region18: #{_basic_block_fwd.1} parent=0 // pred_check
    _
  $region19: #{_basic_block_fwd.1} parent=0 // pred_check_branch
    %23 = sbr.rel (0) target = $region21
  $region20: #{_basic_block_fwd.1} parent=0 // pred_region
    _
  $region21: #{_basic_block_fwd.1} parent=0 // pred_fallthru
    _
  // Predicated region
  $region22: #{_basic_block_fwd.1} parent=0 // pred_check
    _
  $region23: #{_basic_block_fwd.1} parent=0 // pred_check_branch
    %25 = sbr.rel (0) target = $region25
  $region24: #{_basic_block_fwd.1} parent=0 // pred_region
    _
  $region25: #{_basic_block_fwd.1} parent=0 // pred_fallthru
    _
  // Predicated region
  $region26: #{_basic_block_fwd.1} parent=0 // pred_check
    _
  $region27: #{_basic_block_fwd.1} parent=0 // pred_check_branch
    %27 = sbr.rel (0) target = $region29
  $region28: #{_basic_block_fwd.1} parent=0 // pred_region
    _
  $region29: #{_basic_block_fwd.1} parent=0 // pred_fallthru
    _
  // Predicated region
  $region30: #{_basic_block_fwd.1} parent=0 // pred_check
    _
  $region31: #{_basic_block_fwd.1} parent=0 // pred_check_branch
    %29 = sbr.rel (0) target = $region33
  $region32: #{_basic_block_fwd.1} parent=0 // pred_region
    _
  $region33: #{_basic_block_fwd.1} parent=0 // pred_fallthru
    _
  // Predicated region
  $region34: #{_basic_block_fwd.1} parent=0 // pred_check
    _
  $region35: #{_basic_block_fwd.1} parent=0 // pred_check_branch
    %31 = sbr.rel (0) target = $region37
  $region36: #{_basic_block_fwd.1} parent=0 // pred_region
    _
  $region37: #{_basic_block_fwd.1} parent=0 // pred_fallthru
    _
  %v33 = vld [vmem:[%s3] sm:$0xff]
  %v34 = vld [vmem:[%s3 + $0x8] sm:$0xff]
  %v35 = vld [vmem:[%s3 + $0x10] sm:$0xff]
  %v36 = vld [vmem:[%s3 + $0x18] sm:$0xff]
  %v37 = vld [vmem:[%s3 + $0x20] sm:$0xff]
  %v38 = vld [vmem:[%s3 + $0x28] sm:$0xff]
  %v39 = vld [vmem:[%s3 + $0x30] sm:$0xff]
  %v40 = vld [vmem:[%s3 + $0x38] sm:$0xff]
  %v41 = vld [vmem:[%s0] sm:$0xf]
  %v42 = vld [vmem:[%s0 + $0x4] sm:$0xf]
  %v43 = vld [vmem:[%s0 + $0xc] sm:$0xf]
  %v44 = vld [vmem:[%s0 + $0x10] sm:$0xf]
  %v45 = vld [vmem:[%s1] sm:$0xf]
  %v46 = vld [vmem:[%s1 + $0x4] sm:$0xf]
  %v47 = vld [vmem:[%s1 + $0x8] sm:$0xf]
  %v48 = vld [vmem:[%s1 + $0xc] sm:$0xf]
  %v49 = vld [vmem:[%s1 + $0x10] sm:$0xf]
  %v50 = vld [vmem:[%s1 + $0x14] sm:$0xf]
  %v51 = vld [vmem:[%s1 + $0x18] sm:$0xf]
  %v52 = vld [vmem:[%s1 + $0x1c] sm:$0xf]
  %v53 = vld [vmem:[%s1 + $0x20] sm:$0xf]
  %v54 = vld [vmem:[%s0 + $0x8] sm:$0x1]
  %v55 = vld [vmem:[%s0 + $0x14] sm:$0x1]
  %vm56 = vsmask.f32 3328
  %vm57 = vsmask.f32 7440
  %vm58 = vmor %vm56, %vm57
  %v60 = vshrl.u32 %v41, 16
  %v62 = vrot.slane %v60, 4
  %v63 = vshll.u32 %v41, 16
  %v65 = vrot.slane %v63, 5
  %v66 = vor.u32 %v62, %v65
  %v67 = vrot.slane %v66, 4
  %v69 = vshll.u32 %v42, 16
  %v71 = vrot.slane %v69, 5
  %v72 = vsel %vm58, %v67, %v71
  %v73 = vshrl.u32 %v42, 16
  %v75 = vrot.slane %v73, 4
  %v76 = vor.u32 %v75, %v71
  %v77 = vrot.slane %v76, 4
  %v79 = vshll.u32 %v54, 16
  %v81 = vrot.slane %v79, 5
  %v82 = vsel %vm58, %v77, %v81
  %v84 = vshrl.u32 %v43, 16
  %v86 = vrot.slane %v84, 4
  %v87 = vshll.u32 %v43, 16
  %v89 = vrot.slane %v87, 5
  %v90 = vor.u32 %v86, %v89
  %v91 = vrot.slane %v90, 4
  %v93 = vshll.u32 %v44, 16
  %v95 = vrot.slane %v93, 5
  %v96 = vsel %vm58, %v91, %v95
  %v97 = vshrl.u32 %v44, 16
  %v99 = vrot.slane %v97, 4
  %v100 = vor.u32 %v99, %v95
  %v101 = vrot.slane %v100, 4
  %v103 = vshll.u32 %v55, 16
  %v105 = vrot.slane %v103, 5
  %v106 = vsel %vm58, %v101, %v105
  %s107 = scalar_lea.vmem %s1, 36
  %v108 = vld [vmem:[%s107] sm:$0xf]
  %v109 = vld [vmem:[%s107 + $0x4] sm:$0xf]
  %v110 = vld [vmem:[%s107 + $0x8] sm:$0xf]
  %v111 = vld [vmem:[%s107 + $0xc] sm:$0xf]
  %v112 = vld [vmem:[%s107 + $0x10] sm:$0xf]
  %v113 = vld [vmem:[%s107 + $0x14] sm:$0xf]
  %v114 = vld [vmem:[%s107 + $0x18] sm:$0xf]
  %v115 = vld [vmem:[%s107 + $0x1c] sm:$0xf]
  %v116 = vld [vmem:[%s107 + $0x20] sm:$0xf]
  %v117 = vunpack.c.l.b16 %v72
  %v118 = vunpack.c.l.b16 %v82
  %v119 = vunpack.c.l.b16 %v96
  %v120 = vunpack.c.l.b16 %v106
  %v121 = vpack.c.b16 %v118, %v117
  %v122 = vpack.c.b16 %v120, %v119
  %v132 = vunpack.c.l.b16 %v108
  %v133 = vunpack.c.l.b16 %v109
  %v134 = vunpack.c.l.b16 %v110
  %v135 = vunpack.c.l.b16 %v111
  %v136 = vunpack.c.l.b16 %v112
  %v137 = vunpack.c.l.b16 %v113
  %v138 = vunpack.c.l.b16 %v114
  %v139 = vunpack.c.l.b16 %v115
  %v140 = vunpack.c.l.b16 %v116
  %v141 = vpack.c.b16 %v133, %v132
  %v142 = vpack.c.b16 %v135, %v134
  %v143 = vpack.c.b16 %v137, %v136
  %v144 = vpack.c.b16 %v139, %v138
  %v145 = vpack.c.b16 %v140, %v140
  %vm150 = vcmask 588800
  %v152 = vsel %vm150, %v121, 0
  %v155 = vsel %vm150, %v122, 0
  %vm157 = vcmask 1043456
  %v159 = vsel %vm157, %v145, 0
  %161 = vmatpush.bf16.msra.mxu0 0
  %162 = vmatpush.bf16.msra.mxu0 0
  %163 = vmatpush.bf16.msra.mxu0 0
  %164 = vmatpush.bf16.msra.mxu0 %v159
  %165 = vmatpush.bf16.msra.mxu0 %v144
  %166 = vmatpush.bf16.msra.mxu0 %v143
  %167 = vmatpush.bf16.msra.mxu0 %v142
  %168 = vmatpush.bf16.msra.mxu0 %v141
  %169 = vmatmul.bf16.gmra.mxu0 %v152
  %v170 = vpop.f32.mrf.mxu0
  %v171 = vadd.f32 0.0, %v170
  %v172 = vpop.f32.mrf.mxu0
  %v173 = vadd.f32 0.0, %v172
  %174 = vmatmul.bf16.gmra.mxu0 %v155
  %v175 = vpop.f32.mrf.mxu0
  %v176 = vadd.f32 0.0, %v175
  %v177 = vpop.f32.mrf.mxu0
  %v178 = vadd.f32 0.0, %v177
  %179 = vdwg.mxu0
  %v184 = vunpack.c.l.b16 %v41
  %v185 = vunpack.c.l.b16 %v42
  %v186 = vunpack.c.l.b16 %v43
  %v187 = vunpack.c.l.b16 %v44
  %v188 = vpack.c.b16 %v185, %v184
  %v189 = vpack.c.b16 %v187, %v186
  %v199 = vunpack.c.l.b16 %v45
  %v200 = vunpack.c.l.b16 %v46
  %v201 = vunpack.c.l.b16 %v47
  %v202 = vunpack.c.l.b16 %v48
  %v203 = vunpack.c.l.b16 %v49
  %v204 = vunpack.c.l.b16 %v50
  %v205 = vunpack.c.l.b16 %v51
  %v206 = vunpack.c.l.b16 %v52
  %v207 = vunpack.c.l.b16 %v53
  %v208 = vpack.c.b16 %v200, %v199
  %v209 = vpack.c.b16 %v202, %v201
  %v210 = vpack.c.b16 %v204, %v203
  %v211 = vpack.c.b16 %v206, %v205
  %v212 = vpack.c.b16 %v207, %v207
  %v218 = vsel %vm150, %v188, 0
  %v221 = vsel %vm150, %v189, 0
  %v224 = vsel %vm157, %v212, 0
  %226 = vmatpush.bf16.msra.mxu0 0
  %227 = vmatpush.bf16.msra.mxu0 0
  %228 = vmatpush.bf16.msra.mxu0 0
  %229 = vmatpush.bf16.msra.mxu0 %v224
  %230 = vmatpush.bf16.msra.mxu0 %v211
  %231 = vmatpush.bf16.msra.mxu0 %v210
  %232 = vmatpush.bf16.msra.mxu0 %v209
  %233 = vmatpush.bf16.msra.mxu0 %v208
  %234 = vmatmul.bf16.gmra.mxu0 %v218
  %v235 = vpop.f32.mrf.mxu0
  %v236 = vadd.f32 %v171, %v235
  %v237 = vpop.f32.mrf.mxu0
  %v238 = vadd.f32 %v173, %v237
  %239 = vmatmul.bf16.gmra.mxu0 %v221
  %v240 = vpop.f32.mrf.mxu0
  %v241 = vadd.f32 %v176, %v240
  %v242 = vpop.f32.mrf.mxu0
  %v243 = vadd.f32 %v178, %v242
  %244 = vdwg.mxu0
  %v245 = vld [vmem:[%s0] sm:$0xe]
  %v246 = vld [vmem:[%s0 + $0xc] sm:$0xe]
  %vm251 = vcmask 1042432
  %vm252 = vcmask 1046532
  %vm253 = vmor %vm251, %vm252
  %v254 = vrot.slane %v245, 5
  %v255 = vrot.slane %v254, 4
  %v256 = vrot.slane %v42, 5
  %v257 = vsel %vm253, %v255, %v256
  %v258 = vrot.slane %v256, 4
  %v259 = vrot.slane %v54, 5
  %v260 = vsel %vm253, %v258, %v259
  %v261 = vrot.slane %v246, 5
  %v262 = vrot.slane %v261, 4
  %v263 = vrot.slane %v44, 5
  %v264 = vsel %vm253, %v262, %v263
  %v265 = vrot.slane %v263, 4
  %v266 = vrot.slane %v55, 5
  %v267 = vsel %vm253, %v265, %v266
  %s268 = scalar_lea.vmem %s1, 72
  %v269 = vld [vmem:[%s268] sm:$0xf]
  %v270 = vld [vmem:[%s268 + $0x4] sm:$0xf]
  %v271 = vld [vmem:[%s268 + $0x8] sm:$0xf]
  %v272 = vld [vmem:[%s268 + $0xc] sm:$0xf]
  %v273 = vld [vmem:[%s268 + $0x10] sm:$0xf]
  %v274 = vld [vmem:[%s268 + $0x14] sm:$0xf]
  %v275 = vld [vmem:[%s268 + $0x18] sm:$0xf]
  %v276 = vld [vmem:[%s268 + $0x1c] sm:$0xf]
  %v277 = vld [vmem:[%s268 + $0x20] sm:$0xf]
  %v278 = vunpack.c.l.b16 %v257
  %v279 = vunpack.c.l.b16 %v260
  %v280 = vunpack.c.l.b16 %v264
  %v281 = vunpack.c.l.b16 %v267
  %v282 = vpack.c.b16 %v279, %v278
  %v283 = vpack.c.b16 %v281, %v280
  %v293 = vunpack.c.l.b16 %v269
  %v294 = vunpack.c.l.b16 %v270
  %v295 = vunpack.c.l.b16 %v271
  %v296 = vunpack.c.l.b16 %v272
  %v297 = vunpack.c.l.b16 %v273
  %v298 = vunpack.c.l.b16 %v274
  %v299 = vunpack.c.l.b16 %v275
  %v300 = vunpack.c.l.b16 %v276
  %v301 = vunpack.c.l.b16 %v277
  %v302 = vpack.c.b16 %v294, %v293
  %v303 = vpack.c.b16 %v296, %v295
  %v304 = vpack.c.b16 %v298, %v297
  %v305 = vpack.c.b16 %v300, %v299
  %v306 = vpack.c.b16 %v301, %v301
  %v312 = vsel %vm150, %v282, 0
  %v315 = vsel %vm150, %v283, 0
  %v318 = vsel %vm157, %v306, 0
  %320 = vmatpush.bf16.msra.mxu0 0
  %321 = vmatpush.bf16.msra.mxu0 0
  %322 = vmatpush.bf16.msra.mxu0 0
  %323 = vmatpush.bf16.msra.mxu0 %v318
  %324 = vmatpush.bf16.msra.mxu0 %v305
  %325 = vmatpush.bf16.msra.mxu0 %v304
  %326 = vmatpush.bf16.msra.mxu0 %v303
  %327 = vmatpush.bf16.msra.mxu0 %v302
  %328 = vmatmul.bf16.gmra.mxu0 %v312
  %v329 = vpop.f32.mrf.mxu0
  %v330 = vadd.f32 0.0, %v329
  %v331 = vpop.f32.mrf.mxu0
  %v332 = vadd.f32 0.0, %v331
  %333 = vmatmul.bf16.gmra.mxu0 %v315
  %v334 = vpop.f32.mrf.mxu0
  %v335 = vadd.f32 0.0, %v334
  %v336 = vpop.f32.mrf.mxu0
  %v337 = vadd.f32 0.0, %v336
  %338 = vdwg.mxu0
  %v339 = vadd.f32 %v236, %v330
  %v340 = vadd.f32 %v238, %v332
  %v341 = vadd.f32 %v241, %v335
  %v342 = vadd.f32 %v243, %v337
  %v343 = vld [vmem:[%s4] sm:$0x1]
  %v344 = vld [vmem:[%s5] sm:$0x1]
  %vm345 = vcmask 523264
  %v346 = vsel %vm345, %v339, 0.0
  %v347 = vsel %vm345, %v340, 0.0
  %v348 = vadd.f32 %v346, %v347
  %v349 = vsel %vm345, %v341, 0.0
  %v350 = vadd.f32 %v348, %v349
  %v351 = vsel %vm345, %v342, 0.0
  %v352 = vadd.f32 %v350, %v351
  %v353 = vrot.slane %v352, 4
  %v354 = vadd.f32 %v352, %v353
  %v355 = vrot.slane %v354, 2
  %v356 = vadd.f32 %v354, %v355
  %v357 = vrot.slane %v356, 1
  %v358 = vadd.f32 %v356, %v357
  %v359 = vmul.f32 %v339, %v339
  %v360 = vmul.f32 %v340, %v340
  %v361 = vmul.f32 %v341, %v341
  %v362 = vmul.f32 %v342, %v342
  %v363 = vsel %vm345, %v359, 0.0
  %v364 = vsel %vm345, %v360, 0.0
  %v365 = vadd.f32 %v363, %v364
  %v366 = vsel %vm345, %v361, 0.0
  %v367 = vadd.f32 %v365, %v366
  %v368 = vsel %vm345, %v362, 0.0
  %v369 = vadd.f32 %v367, %v368
  %v370 = vrot.slane %v369, 4
  %v371 = vadd.f32 %v369, %v370
  %v372 = vrot.slane %v371, 2
  %v373 = vadd.f32 %v371, %v372
  %v374 = vrot.slane %v373, 1
  %v375 = vadd.f32 %v373, %v374
  %v377 = vsel %vm345, %v358, 0
  %379 = vmatpush.msra.mxu0 0.0
  %380 = vmatpush.msra.mxu0 0.0
  %381 = vmatpush.msra.mxu0 0.0
  %382 = vmatpush.msra.mxu0 0.0
  %383 = vmatpush.msra.mxu0 0.0
  %384 = vmatpush.msra.mxu0 0.0
  %385 = vmatpush.msra.mxu0 0.0
  %386 = vmatpush.msra.mxu0 0.0
  %387 = vmatpush.msra.mxu0 %v40
  %388 = vmatpush.msra.mxu0 %v39
  %389 = vmatpush.msra.mxu0 %v38
  %390 = vmatpush.msra.mxu0 %v37
  %391 = vmatpush.msra.mxu0 %v36
  %392 = vmatpush.msra.mxu0 %v35
  %393 = vmatpush.msra.mxu0 %v34
  %394 = vmatpush.msra.mxu0 %v33
  %395 = vmatmul.f32.gmra.mxu0 %v377
  %v396 = vpop.f32.mrf.mxu0
  %v397 = vadd.f32 0.0, %v396
  %398 = vdwg.mxu0
  %v400 = vsel %vm345, %v375, 0
  %402 = vmatpush.msra.mxu0 0.0
  %403 = vmatpush.msra.mxu0 0.0
  %404 = vmatpush.msra.mxu0 0.0
  %405 = vmatpush.msra.mxu0 0.0
  %406 = vmatpush.msra.mxu0 0.0
  %407 = vmatpush.msra.mxu0 0.0
  %408 = vmatpush.msra.mxu0 0.0
  %409 = vmatpush.msra.mxu0 0.0
  %410 = vmatpush.msra.mxu0 %v40
  %411 = vmatpush.msra.mxu0 %v39
  %412 = vmatpush.msra.mxu0 %v38
  %413 = vmatpush.msra.mxu0 %v37
  %414 = vmatpush.msra.mxu0 %v36
  %415 = vmatpush.msra.mxu0 %v35
  %416 = vmatpush.msra.mxu0 %v34
  %417 = vmatpush.msra.mxu0 %v33
  %418 = vmatmul.f32.gmra.mxu0 %v400
  %v419 = vpop.f32.mrf.mxu0
  %v420 = vadd.f32 0.0, %v419
  %421 = vdwg.mxu0
  %v422 = vmul.f32 %v397, 0.001953125
  %v423 = vmul.f32 %v420, 0.001953125
  %v424 = vmul.f32 %v422, %v422
  %v425 = vsub.f32 %v423, %v424
  %v426 = vadd.f32 %v425, 1e-05
  %v427 = vrsqrt.pop %v426
  %v428 = vmul.f32 %v427, %v426
  %v429 = vmul.f32 %v428, %v427
  %v430 = vmul.f32 0.5, %v429
  %v431 = vsub.f32 1.5, %v430
  %v432 = vmul.f32 %v427, %v431
  %vm433 = vweird.f32 %v426
  %vm434 = vweird.f32 %v427
  %vm435 = vmor %vm433, %vm434
  %v436 = vsel %vm435, %v427, %v432
  %v437 = vmul.f32 %v343, %v436
  %v438 = vmul.f32 %v422, %v437
  %v439 = vsub.f32 %v344, %v438
  %v441 = vperm.slane %v437, 0
  %v443 = vmul.f32 %v339, %v441
  %v444 = vmul.f32 %v340, %v441
  %v445 = vmul.f32 %v341, %v441
  %v446 = vmul.f32 %v342, %v441
  %v448 = vperm.slane %v439, 0
  %v450 = vadd.f32 %v443, %v448
  %v451 = vadd.f32 %v444, %v448
  %v452 = vadd.f32 %v445, %v448
  %v453 = vadd.f32 %v446, %v448
  %v454 = vmax.f32 %v450, 0.0
  %v455 = vmax.f32 %v451, 0.0
  %v456 = vmax.f32 %v452, 0.0
  %v457 = vmax.f32 %v453, 0.0
  %vm458 = vcmask 581632
  %459 = vst.msk [vmem:[#allocation2] sm:$0x1] %vm458, 0.0
  %460 = vst.msk [vmem:[#allocation2 + $0x18] sm:$0x1] %vm458, 0.0
  %461 = vst.msk [vmem:[#allocation2 + $0x11] sm:$0x1] %vm458, 0.0
  %462 = vst.msk [vmem:[#allocation2 + $0x29] sm:$0x1] %vm458, 0.0
  %vm463 = vcmask 31744
  %464 = vst.msk [vmem:[#allocation2 + $0x1] sm:$0xff] %vm463, 0.0
  %465 = vst.msk [vmem:[#allocation2 + $0x9] sm:$0xff] %vm463, 0.0
  %466 = vst.msk [vmem:[#allocation2 + $0x19] sm:$0xff] %vm463, 0.0
  %467 = vst.msk [vmem:[#allocation2 + $0x21] sm:$0xff] %vm463, 0.0
  %vm468 = vcmask 589344
  %469 = vst.msk [vmem:[#allocation2 + $0x1] sm:$0xff] %vm468, 0.0
  %470 = vst.msk [vmem:[#allocation2 + $0x9] sm:$0xff] %vm468, 0.0
  %471 = vst.msk [vmem:[#allocation2 + $0x19] sm:$0xff] %vm468, 0.0
  %472 = vst.msk [vmem:[#allocation2 + $0x21] sm:$0xff] %vm468, 0.0
  %477 = vrot.lane.b32.xlu0 %v454, 4
  %v478 = vpop.permute.xlu0 %477
  %479 = vrot.lane.b32.xlu0 %v455, 4
  %v480 = vpop.permute.xlu0 %479
  %481 = vrot.lane.b32.xlu0 %v456, 4
  %v482 = vpop.permute.xlu0 %481
  %483 = vrot.lane.b32.xlu0 %v457, 4
  %v484 = vpop.permute.xlu0 %483
  %vm489 = vcmask 556064
  %490 = vst.msk [vmem:[#allocation2 + $0x1] sm:$0xff] %vm489, %v478
  %491 = vst.msk [vmem:[#allocation2 + $0x9] sm:$0xff] %vm489, %v480
  %492 = vst.msk [vmem:[#allocation2 + $0x19] sm:$0xff] %vm489, %v482
  %493 = vst.msk [vmem:[#allocation2 + $0x21] sm:$0xff] %vm489, %v484
  %v494 = vld [vmem:[#allocation2] sm:$0xff]
  %v495 = vld [vmem:[#allocation2 + $0x8] sm:$0xff]
  %v496 = vld [vmem:[#allocation2 + $0x18] sm:$0xff]
  %v497 = vld [vmem:[#allocation2 + $0x20] sm:$0xff]
  %v498 = vpack.c.bf16 %v495, %v494
  %v499 = vpack.c.bf16 %v497, %v496
  %v500 = vld [vmem:[%s2] sm:$0xf]
  %v501 = vld [vmem:[%s2 + $0x4] sm:$0xf]
  %v502 = vld [vmem:[%s2 + $0x8] sm:$0xf]
  %v503 = vld [vmem:[%s2 + $0xc] sm:$0xf]
  %v504 = vld [vmem:[%s2 + $0x10] sm:$0xf]
  %v505 = vld [vmem:[%s2 + $0x14] sm:$0xf]
  %v506 = vld [vmem:[%s2 + $0x18] sm:$0xf]
  %v507 = vld [vmem:[%s2 + $0x1c] sm:$0xf]
  %v508 = vld [vmem:[%s2 + $0x20] sm:$0xf]
  %v509 = vld [vmem:[#allocation2 + $0x1] sm:$0xff]
  %v510 = vld [vmem:[#allocation2 + $0x9] sm:$0xff]
  %v511 = vld [vmem:[#allocation2 + $0x19] sm:$0xff]
  %v512 = vld [vmem:[#allocation2 + $0x21] sm:$0xff]
  %v513 = vpack.c.bf16 %v510, %v509
  %v514 = vpack.c.bf16 %v512, %v511
  %s515 = scalar_lea.vmem %s2, 36
  %v516 = vld [vmem:[%s515] sm:$0xf]
  %v517 = vld [vmem:[%s515 + $0x4] sm:$0xf]
  %v518 = vld [vmem:[%s515 + $0x8] sm:$0xf]
  %v519 = vld [vmem:[%s515 + $0xc] sm:$0xf]
  %v520 = vld [vmem:[%s515 + $0x10] sm:$0xf]
  %v521 = vld [vmem:[%s515 + $0x14] sm:$0xf]
  %v522 = vld [vmem:[%s515 + $0x18] sm:$0xf]
  %v523 = vld [vmem:[%s515 + $0x1c] sm:$0xf]
  %v524 = vld [vmem:[%s515 + $0x20] sm:$0xf]
  %v534 = vunpack.c.l.b16 %v516
  %v535 = vunpack.c.l.b16 %v517
  %v536 = vunpack.c.l.b16 %v518
  %v537 = vunpack.c.l.b16 %v519
  %v538 = vunpack.c.l.b16 %v520
  %v539 = vunpack.c.l.b16 %v521
  %v540 = vunpack.c.l.b16 %v522
  %v541 = vunpack.c.l.b16 %v523
  %v542 = vunpack.c.l.b16 %v524
  %v543 = vpack.c.b16 %v535, %v534
  %v544 = vpack.c.b16 %v537, %v536
  %v545 = vpack.c.b16 %v539, %v538
  %v546 = vpack.c.b16 %v541, %v540
  %v547 = vpack.c.b16 %v542, %v542
  %v553 = vsel %vm150, %v513, 0
  %v556 = vsel %vm150, %v514, 0
  %v559 = vsel %vm157, %v547, 0
  %561 = vmatpush.bf16.msra.mxu0 0
  %562 = vmatpush.bf16.msra.mxu0 0
  %563 = vmatpush.bf16.msra.mxu0 0
  %564 = vmatpush.bf16.msra.mxu0 %v559
  %565 = vmatpush.bf16.msra.mxu0 %v546
  %566 = vmatpush.bf16.msra.mxu0 %v545
  %567 = vmatpush.bf16.msra.mxu0 %v544
  %568 = vmatpush.bf16.msra.mxu0 %v543
  %569 = vmatmul.bf16.gmra.mxu0 %v553
  %v570 = vpop.f32.mrf.mxu0
  %v571 = vadd.f32 0.0, %v570
  %v572 = vpop.f32.mrf.mxu0
  %v573 = vadd.f32 0.0, %v572
  %574 = vmatmul.bf16.gmra.mxu0 %v556
  %v575 = vpop.f32.mrf.mxu0
  %v576 = vadd.f32 0.0, %v575
  %v577 = vpop.f32.mrf.mxu0
  %v578 = vadd.f32 0.0, %v577
  %579 = vdwg.mxu0
  %v589 = vunpack.c.l.b16 %v500
  %v590 = vunpack.c.l.b16 %v501
  %v591 = vunpack.c.l.b16 %v502
  %v592 = vunpack.c.l.b16 %v503
  %v593 = vunpack.c.l.b16 %v504
  %v594 = vunpack.c.l.b16 %v505
  %v595 = vunpack.c.l.b16 %v506
  %v596 = vunpack.c.l.b16 %v507
  %v597 = vunpack.c.l.b16 %v508
  %v598 = vpack.c.b16 %v590, %v589
  %v599 = vpack.c.b16 %v592, %v591
  %v600 = vpack.c.b16 %v594, %v593
  %v601 = vpack.c.b16 %v596, %v595
  %v602 = vpack.c.b16 %v597, %v597
  %v608 = vsel %vm150, %v498, 0
  %v611 = vsel %vm150, %v499, 0
  %v614 = vsel %vm157, %v602, 0
  %616 = vmatpush.bf16.msra.mxu0 0
  %617 = vmatpush.bf16.msra.mxu0 0
  %618 = vmatpush.bf16.msra.mxu0 0
  %619 = vmatpush.bf16.msra.mxu0 %v614
  %620 = vmatpush.bf16.msra.mxu0 %v601
  %621 = vmatpush.bf16.msra.mxu0 %v600
  %622 = vmatpush.bf16.msra.mxu0 %v599
  %623 = vmatpush.bf16.msra.mxu0 %v598
  %624 = vmatmul.bf16.gmra.mxu0 %v608
  %v625 = vpop.f32.mrf.mxu0
  %v626 = vadd.f32 %v571, %v625
  %v627 = vpop.f32.mrf.mxu0
  %v628 = vadd.f32 %v573, %v627
  %629 = vmatmul.bf16.gmra.mxu0 %v611
  %v630 = vpop.f32.mrf.mxu0
  %v631 = vadd.f32 %v576, %v630
  %v632 = vpop.f32.mrf.mxu0
  %v633 = vadd.f32 %v578, %v632
  %634 = vdwg.mxu0
  %v635 = vld [vmem:[#allocation2 + $0x2] sm:$0xff]
  %v636 = vld [vmem:[#allocation2 + $0xa] sm:$0xff]
  %v637 = vld [vmem:[#allocation2 + $0x1a] sm:$0xff]
  %v638 = vld [vmem:[#allocation2 + $0x22] sm:$0xff]
  %v639 = vpack.c.bf16 %v636, %v635
  %v640 = vpack.c.bf16 %v638, %v637
  %s641 = scalar_lea.vmem %s2, 72
  %v642 = vld [vmem:[%s641] sm:$0xf]
  %v643 = vld [vmem:[%s641 + $0x4] sm:$0xf]
  %v644 = vld [vmem:[%s641 + $0x8] sm:$0xf]
  %v645 = vld [vmem:[%s641 + $0xc] sm:$0xf]
  %v646 = vld [vmem:[%s641 + $0x10] sm:$0xf]
  %v647 = vld [vmem:[%s641 + $0x14] sm:$0xf]
  %v648 = vld [vmem:[%s641 + $0x18] sm:$0xf]
  %v649 = vld [vmem:[%s641 + $0x1c] sm:$0xf]
  %v650 = vld [vmem:[%s641 + $0x20] sm:$0xf]
  %v660 = vunpack.c.l.b16 %v642
  %v661 = vunpack.c.l.b16 %v643
  %v662 = vunpack.c.l.b16 %v644
  %v663 = vunpack.c.l.b16 %v645
  %v664 = vunpack.c.l.b16 %v646
  %v665 = vunpack.c.l.b16 %v647
  %v666 = vunpack.c.l.b16 %v648
  %v667 = vunpack.c.l.b16 %v649
  %v668 = vunpack.c.l.b16 %v650
  %v669 = vpack.c.b16 %v661, %v660
  %v670 = vpack.c.b16 %v663, %v662
  %v671 = vpack.c.b16 %v665, %v664
  %v672 = vpack.c.b16 %v667, %v666
  %v673 = vpack.c.b16 %v668, %v668
  %v679 = vsel %vm150, %v639, 0
  %v682 = vsel %vm150, %v640, 0
  %v685 = vsel %vm157, %v673, 0
  %687 = vmatpush.bf16.msra.mxu0 0
  %688 = vmatpush.bf16.msra.mxu0 0
  %689 = vmatpush.bf16.msra.mxu0 0
  %690 = vmatpush.bf16.msra.mxu0 %v685
  %691 = vmatpush.bf16.msra.mxu0 %v672
  %692 = vmatpush.bf16.msra.mxu0 %v671
  %693 = vmatpush.bf16.msra.mxu0 %v670
  %694 = vmatpush.bf16.msra.mxu0 %v669
  %695 = vmatmul.bf16.gmra.mxu0 %v679
  %v696 = vpop.f32.mrf.mxu0
  %v697 = vadd.f32 0.0, %v696
  %v698 = vpop.f32.mrf.mxu0
  %v699 = vadd.f32 0.0, %v698
  %700 = vmatmul.bf16.gmra.mxu0 %v682
  %v701 = vpop.f32.mrf.mxu0
  %v702 = vadd.f32 0.0, %v701
  %v703 = vpop.f32.mrf.mxu0
  %v704 = vadd.f32 0.0, %v703
  %705 = vdwg.mxu0
  %v706 = vadd.f32 %v626, %v697
  %v707 = vadd.f32 %v628, %v699
  %v708 = vadd.f32 %v631, %v702
  %v709 = vadd.f32 %v633, %v704
  %v710 = vld [vmem:[%s6] sm:$0x1]
  %v711 = vld [vmem:[%s7] sm:$0x1]
  %v712 = vsel %vm345, %v706, 0.0
  %v713 = vsel %vm345, %v707, 0.0
  %v714 = vadd.f32 %v712, %v713
  %v715 = vsel %vm345, %v708, 0.0
  %v716 = vadd.f32 %v714, %v715
  %v717 = vsel %vm345, %v709, 0.0
  %v718 = vadd.f32 %v716, %v717
  %v719 = vrot.slane %v718, 4
  %v720 = vadd.f32 %v718, %v719
  %v721 = vrot.slane %v720, 2
  %v722 = vadd.f32 %v720, %v721
  %v723 = vrot.slane %v722, 1
  %v724 = vadd.f32 %v722, %v723
  %v725 = vmul.f32 %v706, %v706
  %v726 = vmul.f32 %v707, %v707
  %v727 = vmul.f32 %v708, %v708
  %v728 = vmul.f32 %v709, %v709
  %v729 = vsel %vm345, %v725, 0.0
  %v730 = vsel %vm345, %v726, 0.0
  %v731 = vadd.f32 %v729, %v730
  %v732 = vsel %vm345, %v727, 0.0
  %v733 = vadd.f32 %v731, %v732
  %v734 = vsel %vm345, %v728, 0.0
  %v735 = vadd.f32 %v733, %v734
  %v736 = vrot.slane %v735, 4
  %v737 = vadd.f32 %v735, %v736
  %v738 = vrot.slane %v737, 2
  %v739 = vadd.f32 %v737, %v738
  %v740 = vrot.slane %v739, 1
  %v741 = vadd.f32 %v739, %v740
  %v743 = vsel %vm345, %v724, 0
  %745 = vmatpush.msra.mxu0 0.0
  %746 = vmatpush.msra.mxu0 0.0
  %747 = vmatpush.msra.mxu0 0.0
  %748 = vmatpush.msra.mxu0 0.0
  %749 = vmatpush.msra.mxu0 0.0
  %750 = vmatpush.msra.mxu0 0.0
  %751 = vmatpush.msra.mxu0 0.0
  %752 = vmatpush.msra.mxu0 0.0
  %753 = vmatpush.msra.mxu0 %v40
  %754 = vmatpush.msra.mxu0 %v39
  %755 = vmatpush.msra.mxu0 %v38
  %756 = vmatpush.msra.mxu0 %v37
  %757 = vmatpush.msra.mxu0 %v36
  %758 = vmatpush.msra.mxu0 %v35
  %759 = vmatpush.msra.mxu0 %v34
  %760 = vmatpush.msra.mxu0 %v33
  %761 = vmatmul.f32.gmra.mxu0 %v743
  %v762 = vpop.f32.mrf.mxu0
  %v763 = vadd.f32 0.0, %v762
  %764 = vdwg.mxu0
  %v766 = vsel %vm345, %v741, 0
  %768 = vmatpush.msra.mxu0 0.0
  %769 = vmatpush.msra.mxu0 0.0
  %770 = vmatpush.msra.mxu0 0.0
  %771 = vmatpush.msra.mxu0 0.0
  %772 = vmatpush.msra.mxu0 0.0
  %773 = vmatpush.msra.mxu0 0.0
  %774 = vmatpush.msra.mxu0 0.0
  %775 = vmatpush.msra.mxu0 0.0
  %776 = vmatpush.msra.mxu0 %v40
  %777 = vmatpush.msra.mxu0 %v39
  %778 = vmatpush.msra.mxu0 %v38
  %779 = vmatpush.msra.mxu0 %v37
  %780 = vmatpush.msra.mxu0 %v36
  %781 = vmatpush.msra.mxu0 %v35
  %782 = vmatpush.msra.mxu0 %v34
  %783 = vmatpush.msra.mxu0 %v33
  %784 = vmatmul.f32.gmra.mxu0 %v766
  %v785 = vpop.f32.mrf.mxu0
  %v786 = vadd.f32 0.0, %v785
  %787 = vdwg.mxu0
  %v788 = vmul.f32 %v763, 0.001953125
  %v789 = vmul.f32 %v786, 0.001953125
  %v790 = vmul.f32 %v788, %v788
  %v791 = vsub.f32 %v789, %v790
  %v792 = vadd.f32 %v791, 1e-05
  %v793 = vrsqrt.pop %v792
  %v794 = vmul.f32 %v793, %v792
  %v795 = vmul.f32 %v794, %v793
  %v796 = vmul.f32 0.5, %v795
  %v797 = vsub.f32 1.5, %v796
  %v798 = vmul.f32 %v793, %v797
  %vm799 = vweird.f32 %v792
  %vm800 = vweird.f32 %v793
  %vm801 = vmor %vm799, %vm800
  %v802 = vsel %vm801, %v793, %v798
  %v803 = vmul.f32 %v710, %v802
  %v804 = vmul.f32 %v788, %v803
  %v805 = vsub.f32 %v711, %v804
  %v807 = vperm.slane %v803, 0
  %v809 = vmul.f32 %v706, %v807
  %v810 = vmul.f32 %v707, %v807
  %v811 = vmul.f32 %v708, %v807
  %v812 = vmul.f32 %v709, %v807
  %v814 = vperm.slane %v805, 0
  %v816 = vadd.f32 %v809, %v814
  %v817 = vadd.f32 %v810, %v814
  %v818 = vadd.f32 %v811, %v814
  %v819 = vadd.f32 %v812, %v814
  %v820 = vld [vmem:[%s8] sm:$0xff]
  %v821 = vld [vmem:[%s8 + $0x8] sm:$0xff]
  %v822 = vld [vmem:[%s8 + $0x10] sm:$0xff]
  %v823 = vld [vmem:[%s8 + $0x18] sm:$0xff]
  %v824 = vadd.f32 %v816, %v820
  %v825 = vadd.f32 %v817, %v821
  %v826 = vadd.f32 %v818, %v822
  %v827 = vadd.f32 %v819, %v823
  %v828 = vmax.f32 %v824, 0.0
  %v829 = vmax.f32 %v825, 0.0
  %v830 = vmax.f32 %v826, 0.0
  %v831 = vmax.f32 %v827, 0.0
  %832 = vst.msk [vmem:[%s9] sm:$0xff] %vm345, %v828
  %833 = vst.msk [vmem:[%s9 + $0x8] sm:$0xff] %vm345, %v829
  %834 = vst.msk [vmem:[%s9 + $0x10] sm:$0xff] %vm345, %v830
  %835 = vst.msk [vmem:[%s9 + $0x18] sm:$0xff] %vm345, %v831
  // Predicated region
  $region38: #{_basic_block_fwd.1} parent=0 // pred_check
    _
  $region39: #{_basic_block_fwd.1} parent=0 // pred_check_branch
    %837 = sbr.rel (0) target = $region41
  $region40: #{_basic_block_fwd.1} parent=0 // pred_region
    _
  $region41: #{_basic_block_fwd.1} parent=0 // pred_fallthru
    _
  // Predicated region
  $region42: #{_basic_block_fwd.1} parent=0 // pred_check
    _
  $region43: #{_basic_block_fwd.1} parent=0 // pred_check_branch
    %839 = sbr.rel (0) target = $region45
  $region44: #{_basic_block_fwd.1} parent=0 // pred_region
    _
  $region45: #{_basic_block_fwd.1} parent=0 // pred_fallthru
    _

</llo_original>
